<compile_context>
chip_gen: v5e
topology: v5e:2x2
jax: 0.10.0
libtpu: 0.0.40
codegen_flags: <defaults>
</compile_context>

<pallas_src>
import functools

import jax
import jax.numpy as jnp
from jax.experimental import pallas as pl
from jax.experimental.pallas import tpu as pltpu


def _use_bf16_acts():
    """bf16 EUP tanh / bf16 activation plumbing only on v6e / v7x."""
    try:
        kind = jax.devices()[0].device_kind.lower()
    except Exception:
        return False
    return ("v6" in kind) or ("v7" in kind)


def _round_up(n, m):
    return ((n + m - 1) // m) * m


def _value_net_kernel(x_ref, w1_ref, b1_ref, w2_ref, b2_ref, w3_ref, b3_ref,
                      o_ref, *, bf16_acts):
    x = x_ref[...]                                                   # (state_dim, TB) f32
    # Layer 1: f32 operands -> pin HIGHEST (MXU has slack; preserves f32 semantics).
    z1 = jnp.dot(w1_ref[...], x, preferred_element_type=jnp.float32,
                 precision=jax.lax.Precision.HIGHEST) + b1_ref[...]  # (H, TB) f32

    if bf16_acts:
        h1 = jnp.tanh(z1.astype(jnp.bfloat16))                       # stays bf16 (v6e/v7x EUP)
        # Layer 2: bf16 x bf16 MXU with f32 accumulation (w2 pre-cast in wrapper).
        z2 = jnp.dot(w2_ref[...], h1,
                     preferred_element_type=jnp.float32) + b2_ref[...]
        h2 = jnp.tanh(z2.astype(jnp.bfloat16))                       # (H, TB) bf16
        # Layer 3: VPU multiply (bf16) + XLU sublane reduce with f32 accumulation.
        v = jnp.sum(w3_ref[...] * h2, axis=0, keepdims=True,
                    dtype=jnp.float32) + b3_ref[...]
    else:
        h1 = jnp.tanh(z1)                                            # (H, TB) f32
        z2 = jnp.dot(w2_ref[...], h1, preferred_element_type=jnp.float32,
                     precision=jax.lax.Precision.HIGHEST) + b2_ref[...]
        h2 = jnp.tanh(z2)
        v = jnp.sum(w3_ref[...] * h2, axis=0, keepdims=True) + b3_ref[...]

    o_ref[...] = v.astype(o_ref.dtype)                               # (1, TB) lane-dense


def value_net_forward(x, params, *, tile_b=16384, x_is_transposed=False):
    """Forward pass of ValueNet.

    x: (B, state_dim) float32, or (state_dim, B) if x_is_transposed=True
       (lets producers hand over a lane-dense layout and skip a transpose pass).
    Returns torch.squeeze-style output: (B,) (scalar if B == 1).
    """
    w1, b1, w2, b2, w3, b3 = params            # PyTorch layout: w (out, in), b (out, 1)
    if x_is_transposed:
        state_dim, B = x.shape
    else:
        B, state_dim = x.shape
    H = w1.shape[0]

    bf16_acts = _use_bf16_acts()

    # v5e/older keep f32 activations: cap the tile so 2-3 live (H, TB) f32
    # temporaries + double-buffered x/out fit under the 16 MiB default scoped
    # VMEM limit without an override. v6e/v7x (bf16 acts, 32 MiB default) are
    # fine at 16384.
    if not bf16_acts:
        tile_b = min(tile_b, 8192)

    b128 = _round_up(B, 128)
    if b128 <= tile_b:
        if b128 >= 256:
            # Ensure >=2 grid steps so the "parallel" axis can shard across
            # both v7x TensorCores (harmless extra step on v5e/v6e).
            tile_b = _round_up(pl.cdiv(b128, 2), 128)
        else:
            tile_b = b128
    b_pad = _round_up(B, tile_b)

    # Lane-dense input: batch on the last (lane) axis, padded to the tile size.
    # TODO(synk): ideally the producer emits x already as (state_dim, B) so this
    #             transpose+pad HBM pass disappears entirely (x_is_transposed=True).
    if x_is_transposed:
        x_t = x
        if b_pad != B:
            x_t = jnp.pad(x_t, ((0, 0), (0, b_pad - B)))
    else:
        if b_pad != B:
            x_t = jnp.transpose(jnp.pad(x, ((0, b_pad - B), (0, 0))))
        else:
            x_t = jnp.transpose(x)

    # Layer-2/3 weights pre-cast once (not per tile) on the bf16 path.
    w_dtype = jnp.bfloat16 if bf16_acts else jnp.float32
    w2_k = w2.astype(w_dtype)
    w3_col = jnp.reshape(w3, (H, 1)).astype(w_dtype)    # column vector for the VPU reduce

    grid = (b_pad // tile_b,)

    def const_spec(a):
        # Full-array block, constant index_map -> weights stay resident in VMEM.
        return pl.BlockSpec(a.shape, lambda i, _nd=a.ndim: (0,) * _nd)

    out = pl.pallas_call(
        functools.partial(_value_net_kernel, bf16_acts=bf16_acts),
        out_shape=jax.ShapeDtypeStruct((1, b_pad), jnp.float32),
        grid=grid,
        in_specs=[
            pl.BlockSpec((state_dim, tile_b), lambda i: (0, i)),     # streamed x tiles
            const_spec(w1), const_spec(b1),
            const_spec(w2_k), const_spec(b2),
            const_spec(w3_col), const_spec(b3),
        ],
        out_specs=pl.BlockSpec((1, tile_b), lambda i: (0, i)),
        compiler_params=pltpu.CompilerParams(
            dimension_semantics=("parallel",),
        ),
    )(x_t, w1, b1, w2_k, b2, w3_col, b3)

    # torch.squeeze removes all size-1 dims: (B, 1) -> (B,), (1, 1) -> ().
    return jnp.squeeze(out[0, :B])


def init_value_net_params(key, state_dim, hidden_size=64):
    """nn.Linear-style init, U(-1/sqrt(fan_in), 1/sqrt(fan_in)).

    Weights stored in PyTorch (out_features, in_features) layout; biases as
    (out_features, 1) columns (broadcast over the lane/batch axis)."""
    ks = jax.random.split(key, 6)

    def linear(kw, kb, fan_in, fan_out):
        bound = 1.0 / jnp.sqrt(float(fan_in))
        w = jax.random.uniform(kw, (fan_out, fan_in), jnp.float32, -bound, bound)
        b = jax.random.uniform(kb, (fan_out, 1), jnp.float32, -bound, bound)
        return w, b

    w1, b1 = linear(ks[0], ks[1], state_dim, hidden_size)
    w2, b2 = linear(ks[2], ks[3], hidden_size, hidden_size)
    w3, b3 = linear(ks[4], ks[5], state_dim and hidden_size, 1)
    return (w1, b1, w2, b2, w3, b3)


def _reference_forward(x, params, bf16_acts):
    """Pure-JAX reference with the same activation-dtype policy as the kernel."""
    w1, b1, w2, b2, w3, b3 = params
    dot_hi = functools.partial(jnp.dot, precision=jax.lax.Precision.HIGHEST)
    z1 = dot_hi(x, w1.T) + b1[:, 0]
    if bf16_acts:
        h1 = jnp.tanh(z1.astype(jnp.bfloat16))
        z2 = jnp.dot(h1, w2.astype(jnp.bfloat16).T,
                     preferred_element_type=jnp.float32) + b2[:, 0]
        h2 = jnp.tanh(z2.astype(jnp.bfloat16))
        v = jnp.sum(h2 * w3.astype(jnp.bfloat16)[0, :], axis=-1,
                    dtype=jnp.float32) + b3[0, 0]
    else:
        h1 = jnp.tanh(z1)
        h2 = jnp.tanh(dot_hi(h1, w2.T) + b2[:, 0])
        v = dot_hi(h2, w3.T)[..., 0] + b3[0, 0]
    return jnp.squeeze(v)


if __name__ == "__main__":
    key = jax.random.PRNGKey(0)
    k_x, k_x2, k_p = jax.random.split(key, 3)

    batch, state_dim, hidden = 8, 4, 64
    x = jax.random.normal(k_x, (batch, state_dim), dtype=jnp.float32)
    params = init_value_net_params(k_p, state_dim, hidden)

    bf16 = _use_bf16_acts()
    tol = 2e-2 if bf16 else 1e-4

    # Small batch (single tile, padded lanes).
    out = value_net_forward(x, params)
    jax.block_until_ready(out)
    assert out.shape == (batch,), out.shape
    ref = _reference_forward(x, params, bf16)
    assert jnp.allclose(out, ref, atol=tol, rtol=tol), float(jnp.max(jnp.abs(out - ref)))

    # Pre-transposed input path (skips the wrapper transpose pass).
    out_t = value_net_forward(jnp.transpose(x), params, x_is_transposed=True)
    jax.block_until_ready(out_t)
    assert jnp.allclose(out_t, out, atol=1e-6, rtol=1e-6)

    # Medium batch: exercises the >=2-grid-step split and batch padding.
    batch2 = 384
    x2 = jax.random.normal(k_x2, (batch2, state_dim), dtype=jnp.float32)
    out2 = value_net_forward(x2, params)
    jax.block_until_ready(out2)
    assert out2.shape == (batch2,), out2.shape
    ref2 = _reference_forward(x2, params, bf16)
    assert jnp.allclose(out2, ref2, atol=tol, rtol=tol), float(jnp.max(jnp.abs(out2 - ref2)))

    print("KERNEL_OK")
</pallas_src>

<mosaic_0001>
module attributes {stable_mosaic.version = 11 : i64} {
  func.func @_value_net_kernel(%arg0: i32, %arg1: memref<4x128xf32, #tpu.memory_space<vmem>>, %arg2: memref<64x4xf32, #tpu.memory_space<vmem>>, %arg3: memref<64x1xf32, #tpu.memory_space<vmem>>, %arg4: memref<64x64xf32, #tpu.memory_space<vmem>>, %arg5: memref<64x1xf32, #tpu.memory_space<vmem>>, %arg6: memref<64x1xf32, #tpu.memory_space<vmem>>, %arg7: memref<1x1xf32, #tpu.memory_space<vmem>>, %arg8: memref<1x128xf32, #tpu.memory_space<vmem>>) attributes {dimension_semantics = [#tpu.dimension_semantics<parallel>], iteration_bounds = array<i64: 1>, scalar_prefetch = 0 : i64, scratch_operands = 0 : i64, tpu.core_type = #tpu.core_type<tc>, window_params = [{transform_indices = @transform_0, window_bounds = array<i64: 4, 128>}, {pipeline_mode = #tpu.pipeline_mode<synchronous>, transform_indices = @transform_1, window_bounds = array<i64: 64, 4>}, {pipeline_mode = #tpu.pipeline_mode<synchronous>, transform_indices = @transform_2, window_bounds = array<i64: 64, 1>}, {pipeline_mode = #tpu.pipeline_mode<synchronous>, transform_indices = @transform_3, window_bounds = array<i64: 64, 64>}, {pipeline_mode = #tpu.pipeline_mode<synchronous>, transform_indices = @transform_4, window_bounds = array<i64: 64, 1>}, {pipeline_mode = #tpu.pipeline_mode<synchronous>, transform_indices = @transform_5, window_bounds = array<i64: 64, 1>}, {pipeline_mode = #tpu.pipeline_mode<synchronous>, transform_indices = @transform_6, window_bounds = array<i64: 1, 1>}, {transform_indices = @transform_7, window_bounds = array<i64: 1, 128>}]} {
    %c0 = arith.constant 0 : index
    %c0_0 = arith.constant 0 : index
    %0 = vector.load %arg1[%c0, %c0_0] : memref<4x128xf32, #tpu.memory_space<vmem>>, vector<4x128xf32>
    %c0_1 = arith.constant 0 : index
    %c0_2 = arith.constant 0 : index
    %1 = vector.load %arg2[%c0_1, %c0_2] : memref<64x4xf32, #tpu.memory_space<vmem>>, vector<64x4xf32>
    %cst = arith.constant dense<0.000000e+00> : vector<64x128xf32>
    %2 = tpu.matmul %1, %0, %cst {dimension_numbers = #tpu.dot_dimension_numbers<[1], [0], [0], [1], [0, 0, 1, 1], [], []>, precision = #tpu.contract_precision<fp32>} : vector<64x4xf32>, vector<4x128xf32>, vector<64x128xf32> -> vector<64x128xf32>
    %c0_3 = arith.constant 0 : index
    %c0_4 = arith.constant 0 : index
    %3 = vector.load %arg3[%c0_3, %c0_4] : memref<64x1xf32, #tpu.memory_space<vmem>>, vector<64x1xf32>
    %4 = vector.broadcast %3 : vector<64x1xf32> to vector<64x128xf32>
    %5 = arith.addf %2, %4 : vector<64x128xf32>
    %6 = math.tanh %5 : vector<64x128xf32>
    %c0_5 = arith.constant 0 : index
    %c0_6 = arith.constant 0 : index
    %7 = vector.load %arg4[%c0_5, %c0_6] : memref<64x64xf32, #tpu.memory_space<vmem>>, vector<64x64xf32>
    %cst_7 = arith.constant dense<0.000000e+00> : vector<64x128xf32>
    %8 = tpu.matmul %7, %6, %cst_7 {dimension_numbers = #tpu.dot_dimension_numbers<[1], [0], [0], [1], [0, 0, 1, 1], [], []>, precision = #tpu.contract_precision<fp32>} : vector<64x64xf32>, vector<64x128xf32>, vector<64x128xf32> -> vector<64x128xf32>
    %c0_8 = arith.constant 0 : index
    %c0_9 = arith.constant 0 : index
    %9 = vector.load %arg5[%c0_8, %c0_9] : memref<64x1xf32, #tpu.memory_space<vmem>>, vector<64x1xf32>
    %10 = vector.broadcast %9 : vector<64x1xf32> to vector<64x128xf32>
    %11 = arith.addf %8, %10 : vector<64x128xf32>
    %12 = math.tanh %11 : vector<64x128xf32>
    %c0_10 = arith.constant 0 : index
    %c0_11 = arith.constant 0 : index
    %13 = vector.load %arg6[%c0_10, %c0_11] : memref<64x1xf32, #tpu.memory_space<vmem>>, vector<64x1xf32>
    %14 = vector.broadcast %13 : vector<64x1xf32> to vector<64x128xf32>
    %15 = arith.mulf %14, %12 : vector<64x128xf32>
    %cst_12 = arith.constant dense<0.000000e+00> : vector<128xf32>
    %16 = vector.multi_reduction <add>, %15, %cst_12 [0] : vector<64x128xf32> to vector<128xf32>
    %17 = vector.shape_cast %16 : vector<128xf32> to vector<1x128xf32>
    %c0_13 = arith.constant 0 : index
    %c0_14 = arith.constant 0 : index
    %18 = vector.load %arg7[%c0_13, %c0_14] : memref<1x1xf32, #tpu.memory_space<vmem>>, vector<1x1xf32>
    %19 = vector.broadcast %18 : vector<1x1xf32> to vector<1x128xf32>
    %20 = arith.addf %17, %19 : vector<1x128xf32>
    %c0_15 = arith.constant 0 : index
    %c0_16 = arith.constant 0 : index
    %21 = vector.load %arg8[%c0_15, %c0_16] : memref<1x128xf32, #tpu.memory_space<vmem>>, vector<1x128xf32>
    tpu.vector_store %arg8[%c0_15, %c0_16], %20 {strides = array<i32>} : memref<1x128xf32, #tpu.memory_space<vmem>>, vector<1x128xf32>,
    return
  }
  func.func @transform_0(%arg0: i32) -> (i32, i32) {
    %c0_i32 = arith.constant 0 : i32
    %c0_i32_0 = arith.constant 0 : i32
    return %c0_i32, %arg0 : i32, i32
  }
  func.func @transform_1(%arg0: i32) -> (i32, i32) {
    %c0_i32 = arith.constant 0 : i32
    %c0_i32_0 = arith.constant 0 : i32
    %c0_i32_1 = arith.constant 0 : i32
    return %c0_i32, %c0_i32_0 : i32, i32
  }
  func.func @transform_2(%arg0: i32) -> (i32, i32) {
    %c0_i32 = arith.constant 0 : i32
    %c0_i32_0 = arith.constant 0 : i32
    %c0_i32_1 = arith.constant 0 : i32
    return %c0_i32, %c0_i32_0 : i32, i32
  }
  func.func @transform_3(%arg0: i32) -> (i32, i32) {
    %c0_i32 = arith.constant 0 : i32
    %c0_i32_0 = arith.constant 0 : i32
    %c0_i32_1 = arith.constant 0 : i32
    return %c0_i32, %c0_i32_0 : i32, i32
  }
  func.func @transform_4(%arg0: i32) -> (i32, i32) {
    %c0_i32 = arith.constant 0 : i32
    %c0_i32_0 = arith.constant 0 : i32
    %c0_i32_1 = arith.constant 0 : i32
    return %c0_i32, %c0_i32_0 : i32, i32
  }
  func.func @transform_5(%arg0: i32) -> (i32, i32) {
    %c0_i32 = arith.constant 0 : i32
    %c0_i32_0 = arith.constant 0 : i32
    %c0_i32_1 = arith.constant 0 : i32
    return %c0_i32, %c0_i32_0 : i32, i32
  }
  func.func @transform_6(%arg0: i32) -> (i32, i32) {
    %c0_i32 = arith.constant 0 : i32
    %c0_i32_0 = arith.constant 0 : i32
    %c0_i32_1 = arith.constant 0 : i32
    return %c0_i32, %c0_i32_0 : i32, i32
  }
  func.func @transform_7(%arg0: i32) -> (i32, i32) {
    %c0_i32 = arith.constant 0 : i32
    %c0_i32_0 = arith.constant 0 : i32
    return %c0_i32, %arg0 : i32, i32
  }
}

</mosaic_0001>

<llo_original>
// kernel: tpu_custom_call.1
$region0: #{tpu_custom_call.1}
  #allocation0 [shape = 'u32[]', space=smem, size = 0x4, offset = 0x4, fixed_abs, tag = 'smem constant byte address 0x4 - core index']
  #allocation1 [shape = 'u32[72,128]{1,0:T(1,128)}', space=vmem, size = 0x9000, scoped, tag = 'internal scratch']
  #allocation2 [shape = 'f32[1,1]{1,0:T(1,128)S(1)}', space=vmem, size = 0x200, scoped, tag = 'scoped memory for tpu_custom_call.1']
  %s0 = inlined_call_operand.vmem [shape: f32[4,128], index: 0, kind: input, shape index: {}]
  %s1 = inlined_call_operand.vmem [shape: f32[64,4], index: 1, kind: input, shape index: {}]
  %s2 = inlined_call_operand.vmem [shape: f32[64,1], index: 2, kind: input, shape index: {}]
  %s3 = inlined_call_operand.vmem [shape: f32[64,64], index: 3, kind: input, shape index: {}]
  %s4 = inlined_call_operand.vmem [shape: f32[64,1], index: 4, kind: input, shape index: {}]
  %s5 = inlined_call_operand.vmem [shape: f32[64,1], index: 5, kind: input, shape index: {}]
  %s6 = inlined_call_operand.<no memory space> [shape: f32[1,1], index: 6, kind: input, shape index: {}]
  %s7 = inlined_call_operand.hbm [shape: f32[1,128], index: 7, kind: output, shape index: {}]
  %s8 = sld [smem:[#allocation0]]
  $region38: #{tpu_custom_call.1} parent=0
    _
  %s10 = ssub.s32 1, %s8
  %s11 = scalar_select 0, %s10, %s8
  %v12 = vstv %s6
  %13 = vst [vmem:[#allocation2] sm:$0x1] %v12
  $region1: #{tpu_custom_call.1} parent=0
    #allocation3 [shape = 'u8[512]{0}', space=vmem, size = 0x400, scoped, tag = 'output window, operand 0, single buffered']
    #allocation4 [shape = 's32[1]{0}', space=sflag, size = 0x4, scoped, tag = 'scoped memory for tpu_custom_call.1']
    %14 = vsyncpa [#allocation4], 0
    // Predicated region
    $region2: #{tpu_custom_call.1} parent=1 // pred_check
      _
    $region3: #{tpu_custom_call.1} parent=1 // pred_check_branch
      %16 = sbr.rel (0) target = $region5
    $region4: #{tpu_custom_call.1} parent=1 // pred_region
      _
    $region5: #{tpu_custom_call.1} parent=1 // pred_fallthru
      _
    // Predicated region
    $region6: #{tpu_custom_call.1} parent=1 // pred_check
      _
    $region7: #{tpu_custom_call.1} parent=1 // pred_check_branch
      %18 = sbr.rel (0) target = $region9
    $region8: #{tpu_custom_call.1} parent=1 // pred_region
      _
    $region9: #{tpu_custom_call.1} parent=1 // pred_fallthru
      _
    // Predicated region
    $region10: #{tpu_custom_call.1} parent=1 // pred_check
      _
    $region11: #{tpu_custom_call.1} parent=1 // pred_check_branch
      %20 = sbr.rel (0) target = $region13
    $region12: #{tpu_custom_call.1} parent=1 // pred_region
      _
    $region13: #{tpu_custom_call.1} parent=1 // pred_fallthru
      _
    // Predicated region
    $region14: #{tpu_custom_call.1} parent=1 // pred_check
      _
    $region15: #{tpu_custom_call.1} parent=1 // pred_check_branch
      %22 = sbr.rel (0) target = $region17
    $region16: #{tpu_custom_call.1} parent=1 // pred_region
      _
    $region17: #{tpu_custom_call.1} parent=1 // pred_fallthru
      _
    // Predicated region
    $region18: #{tpu_custom_call.1} parent=1 // pred_check
      _
    $region19: #{tpu_custom_call.1} parent=1 // pred_check_branch
      %24 = sbr.rel (0) target = $region21
    $region20: #{tpu_custom_call.1} parent=1 // pred_region
      _
    $region21: #{tpu_custom_call.1} parent=1 // pred_fallthru
      _
    // Predicated region
    $region22: #{tpu_custom_call.1} parent=1 // pred_check
      _
    $region23: #{tpu_custom_call.1} parent=1 // pred_check_branch
      %26 = sbr.rel (0) target = $region25
    $region24: #{tpu_custom_call.1} parent=1 // pred_region
      _
    $region25: #{tpu_custom_call.1} parent=1 // pred_fallthru
      _
    // Predicated region
    $region26: #{tpu_custom_call.1} parent=1 // pred_check
      _
    $region27: #{tpu_custom_call.1} parent=1 // pred_check_branch
      %28 = sbr.rel (0) target = $region29
    $region28: #{tpu_custom_call.1} parent=1 // pred_region
      _
    $region29: #{tpu_custom_call.1} parent=1 // pred_fallthru
      _
    %v29 = vld [vmem:[%s0] sm:$0xf]
    %v30 = vld [vmem:[%s1] sm:$0xff]
    %v31 = vld [vmem:[%s1 + $0x8] sm:$0xff]
    %v32 = vld [vmem:[%s1 + $0x10] sm:$0xff]
    %v33 = vld [vmem:[%s1 + $0x18] sm:$0xff]
    %v34 = vld [vmem:[%s1 + $0x20] sm:$0xff]
    %v35 = vld [vmem:[%s1 + $0x28] sm:$0xff]
    %v36 = vld [vmem:[%s1 + $0x30] sm:$0xff]
    %v37 = vld [vmem:[%s1 + $0x38] sm:$0xff]
    %v38 = vld [vmem:[%s2] sm:$0xff]
    %v39 = vld [vmem:[%s2 + $0x8] sm:$0xff]
    %v40 = vld [vmem:[%s2 + $0x10] sm:$0xff]
    %v41 = vld [vmem:[%s2 + $0x18] sm:$0xff]
    %v42 = vld [vmem:[%s2 + $0x20] sm:$0xff]
    %v43 = vld [vmem:[%s2 + $0x28] sm:$0xff]
    %v44 = vld [vmem:[%s2 + $0x30] sm:$0xff]
    %v45 = vld [vmem:[%s2 + $0x38] sm:$0xff]
    %47 = vset.pattern.permute.xlu0 0
    %48 = vperm.xlu0 %47, %v38
    %v49 = vpop.permute.xlu0 %48
    %52 = vset.pattern.permute.xlu0 0
    %53 = vperm.xlu0 %52, %v39
    %v54 = vpop.permute.xlu0 %53
    %57 = vset.pattern.permute.xlu0 0
    %58 = vperm.xlu0 %57, %v40
    %v59 = vpop.permute.xlu0 %58
    %62 = vset.pattern.permute.xlu0 0
    %63 = vperm.xlu0 %62, %v41
    %v64 = vpop.permute.xlu0 %63
    %67 = vset.pattern.permute.xlu0 0
    %68 = vperm.xlu0 %67, %v42
    %v69 = vpop.permute.xlu0 %68
    %72 = vset.pattern.permute.xlu0 0
    %73 = vperm.xlu0 %72, %v43
    %v74 = vpop.permute.xlu0 %73
    %77 = vset.pattern.permute.xlu0 0
    %78 = vperm.xlu0 %77, %v44
    %v79 = vpop.permute.xlu0 %78
    %82 = vset.pattern.permute.xlu0 0
    %83 = vperm.xlu0 %82, %v45
    %v84 = vpop.permute.xlu0 %83
    %vm86 = vcmask 31744
    %v88 = vsel %vm86, %v30, 0
    %v91 = vsel %vm86, %v31, 0
    %v94 = vsel %vm86, %v32, 0
    %v97 = vsel %vm86, %v33, 0
    %v100 = vsel %vm86, %v34, 0
    %v103 = vsel %vm86, %v35, 0
    %v106 = vsel %vm86, %v36, 0
    %v109 = vsel %vm86, %v37, 0
    %vm111 = vcmask 1043456
    %v113 = vsel %vm111, %v29, 0
    %115 = vmatpush.msra.mxu0 0.0
    %116 = vmatpush.msra.mxu0 0.0
    %117 = vmatpush.msra.mxu0 0.0
    %118 = vmatpush.msra.mxu0 0.0
    %119 = vmatpush.msra.mxu0 0.0
    %120 = vmatpush.msra.mxu0 0.0
    %121 = vmatpush.msra.mxu0 0.0
    %122 = vmatpush.msra.mxu0 0.0
    %123 = vmatpush.msra.mxu0 0.0
    %124 = vmatpush.msra.mxu0 0.0
    %125 = vmatpush.msra.mxu0 0.0
    %126 = vmatpush.msra.mxu0 0.0
    %127 = vmatpush.msra.mxu0 0.0
    %128 = vmatpush.msra.mxu0 0.0
    %129 = vmatpush.msra.mxu0 0.0
    %v130 = vand.u32 %v113, 4294901760
    %131 = vmatpush.msra.mxu0 %v130
    %v132 = vand.u32 %v88, 4294901760
    %v133 = vsub.f32 %v88, %v132
    %v134 = vand.u32 %v133, 4294901760
    %v135 = vsub.f32 %v133, %v134
    %v136 = vand.u32 %v135, 4294901760
    %137 = vmatmul.f32.gmra.mxu0 %v136
    %v138 = vpop.f32.mrf.mxu0
    %v139 = vadd.f32 %v49, %v138
    %v140 = vand.u32 %v91, 4294901760
    %v141 = vsub.f32 %v91, %v140
    %v142 = vand.u32 %v141, 4294901760
    %v143 = vsub.f32 %v141, %v142
    %v144 = vand.u32 %v143, 4294901760
    %145 = vmatmul.f32.gmra.mxu0 %v144
    %v146 = vpop.f32.mrf.mxu0
    %v147 = vadd.f32 %v54, %v146
    %v148 = vand.u32 %v94, 4294901760
    %v149 = vsub.f32 %v94, %v148
    %v150 = vand.u32 %v149, 4294901760
    %v151 = vsub.f32 %v149, %v150
    %v152 = vand.u32 %v151, 4294901760
    %153 = vmatmul.f32.gmra.mxu0 %v152
    %v154 = vpop.f32.mrf.mxu0
    %v155 = vadd.f32 %v59, %v154
    %v156 = vand.u32 %v97, 4294901760
    %v157 = vsub.f32 %v97, %v156
    %v158 = vand.u32 %v157, 4294901760
    %v159 = vsub.f32 %v157, %v158
    %v160 = vand.u32 %v159, 4294901760
    %161 = vmatmul.f32.gmra.mxu0 %v160
    %v162 = vpop.f32.mrf.mxu0
    %v163 = vadd.f32 %v64, %v162
    %v164 = vand.u32 %v100, 4294901760
    %v165 = vsub.f32 %v100, %v164
    %v166 = vand.u32 %v165, 4294901760
    %v167 = vsub.f32 %v165, %v166
    %v168 = vand.u32 %v167, 4294901760
    %169 = vmatmul.f32.gmra.mxu0 %v168
    %v170 = vpop.f32.mrf.mxu0
    %v171 = vadd.f32 %v69, %v170
    %v172 = vand.u32 %v103, 4294901760
    %v173 = vsub.f32 %v103, %v172
    %v174 = vand.u32 %v173, 4294901760
    %v175 = vsub.f32 %v173, %v174
    %v176 = vand.u32 %v175, 4294901760
    %177 = vmatmul.f32.gmra.mxu0 %v176
    %v178 = vpop.f32.mrf.mxu0
    %v179 = vadd.f32 %v74, %v178
    %v180 = vand.u32 %v106, 4294901760
    %v181 = vsub.f32 %v106, %v180
    %v182 = vand.u32 %v181, 4294901760
    %v183 = vsub.f32 %v181, %v182
    %v184 = vand.u32 %v183, 4294901760
    %185 = vmatmul.f32.gmra.mxu0 %v184
    %v186 = vpop.f32.mrf.mxu0
    %v187 = vadd.f32 %v79, %v186
    %v188 = vand.u32 %v109, 4294901760
    %v189 = vsub.f32 %v109, %v188
    %v190 = vand.u32 %v189, 4294901760
    %v191 = vsub.f32 %v189, %v190
    %v192 = vand.u32 %v191, 4294901760
    %193 = vmatmul.f32.gmra.mxu0 %v192
    %v194 = vpop.f32.mrf.mxu0
    %v195 = vadd.f32 %v84, %v194
    %196 = vdwg.mxu0
    %197 = vmatpush.msra.mxu0 0.0
    %198 = vmatpush.msra.mxu0 0.0
    %199 = vmatpush.msra.mxu0 0.0
    %200 = vmatpush.msra.mxu0 0.0
    %201 = vmatpush.msra.mxu0 0.0
    %202 = vmatpush.msra.mxu0 0.0
    %203 = vmatpush.msra.mxu0 0.0
    %204 = vmatpush.msra.mxu0 0.0
    %205 = vmatpush.msra.mxu0 0.0
    %206 = vmatpush.msra.mxu0 0.0
    %207 = vmatpush.msra.mxu0 0.0
    %208 = vmatpush.msra.mxu0 0.0
    %209 = vmatpush.msra.mxu0 0.0
    %210 = vmatpush.msra.mxu0 0.0
    %211 = vmatpush.msra.mxu0 0.0
    %v212 = vand.u32 %v113, 4294901760
    %v213 = vsub.f32 %v113, %v212
    %v214 = vand.u32 %v213, 4294901760
    %v215 = vsub.f32 %v213, %v214
    %v216 = vand.u32 %v215, 4294901760
    %217 = vmatpush.msra.mxu0 %v216
    %v218 = vand.u32 %v88, 4294901760
    %219 = vmatmul.f32.gmra.mxu0 %v218
    %v220 = vpop.f32.mrf.mxu0
    %v221 = vadd.f32 %v139, %v220
    %v222 = vand.u32 %v91, 4294901760
    %223 = vmatmul.f32.gmra.mxu0 %v222
    %v224 = vpop.f32.mrf.mxu0
    %v225 = vadd.f32 %v147, %v224
    %v226 = vand.u32 %v94, 4294901760
    %227 = vmatmul.f32.gmra.mxu0 %v226
    %v228 = vpop.f32.mrf.mxu0
    %v229 = vadd.f32 %v155, %v228
    %v230 = vand.u32 %v97, 4294901760
    %231 = vmatmul.f32.gmra.mxu0 %v230
    %v232 = vpop.f32.mrf.mxu0
    %v233 = vadd.f32 %v163, %v232
    %v234 = vand.u32 %v100, 4294901760
    %235 = vmatmul.f32.gmra.mxu0 %v234
    %v236 = vpop.f32.mrf.mxu0
    %v237 = vadd.f32 %v171, %v236
    %v238 = vand.u32 %v103, 4294901760
    %239 = vmatmul.f32.gmra.mxu0 %v238
    %v240 = vpop.f32.mrf.mxu0
    %v241 = vadd.f32 %v179, %v240
    %v242 = vand.u32 %v106, 4294901760
    %243 = vmatmul.f32.gmra.mxu0 %v242
    %v244 = vpop.f32.mrf.mxu0
    %v245 = vadd.f32 %v187, %v244
    %v246 = vand.u32 %v109, 4294901760
    %247 = vmatmul.f32.gmra.mxu0 %v246
    %v248 = vpop.f32.mrf.mxu0
    %v249 = vadd.f32 %v195, %v248
    %250 = vdwg.mxu0
    %251 = vmatpush.msra.mxu0 0.0
    %252 = vmatpush.msra.mxu0 0.0
    %253 = vmatpush.msra.mxu0 0.0
    %254 = vmatpush.msra.mxu0 0.0
    %255 = vmatpush.msra.mxu0 0.0
    %256 = vmatpush.msra.mxu0 0.0
    %257 = vmatpush.msra.mxu0 0.0
    %258 = vmatpush.msra.mxu0 0.0
    %259 = vmatpush.msra.mxu0 0.0
    %260 = vmatpush.msra.mxu0 0.0
    %261 = vmatpush.msra.mxu0 0.0
    %262 = vmatpush.msra.mxu0 0.0
    %263 = vmatpush.msra.mxu0 0.0
    %264 = vmatpush.msra.mxu0 0.0
    %265 = vmatpush.msra.mxu0 0.0
    %v266 = vand.u32 %v113, 4294901760
    %v267 = vsub.f32 %v113, %v266
    %268 = vmatpush.msra.mxu0 %v267
    %v269 = vand.u32 %v88, 4294901760
    %v270 = vsub.f32 %v88, %v269
    %271 = vmatmul.f32.gmra.mxu0 %v270
    %v272 = vpop.f32.mrf.mxu0
    %v273 = vadd.f32 %v221, %v272
    %v274 = vand.u32 %v91, 4294901760
    %v275 = vsub.f32 %v91, %v274
    %276 = vmatmul.f32.gmra.mxu0 %v275
    %v277 = vpop.f32.mrf.mxu0
    %v278 = vadd.f32 %v225, %v277
    %v279 = vand.u32 %v94, 4294901760
    %v280 = vsub.f32 %v94, %v279
    %281 = vmatmul.f32.gmra.mxu0 %v280
    %v282 = vpop.f32.mrf.mxu0
    %v283 = vadd.f32 %v229, %v282
    %v284 = vand.u32 %v97, 4294901760
    %v285 = vsub.f32 %v97, %v284
    %286 = vmatmul.f32.gmra.mxu0 %v285
    %v287 = vpop.f32.mrf.mxu0
    %v288 = vadd.f32 %v233, %v287
    %v289 = vand.u32 %v100, 4294901760
    %v290 = vsub.f32 %v100, %v289
    %291 = vmatmul.f32.gmra.mxu0 %v290
    %v292 = vpop.f32.mrf.mxu0
    %v293 = vadd.f32 %v237, %v292
    %v294 = vand.u32 %v103, 4294901760
    %v295 = vsub.f32 %v103, %v294
    %296 = vmatmul.f32.gmra.mxu0 %v295
    %v297 = vpop.f32.mrf.mxu0
    %v298 = vadd.f32 %v241, %v297
    %v299 = vand.u32 %v106, 4294901760
    %v300 = vsub.f32 %v106, %v299
    %301 = vmatmul.f32.gmra.mxu0 %v300
    %v302 = vpop.f32.mrf.mxu0
    %v303 = vadd.f32 %v245, %v302
    %v304 = vand.u32 %v109, 4294901760
    %v305 = vsub.f32 %v109, %v304
    %306 = vmatmul.f32.gmra.mxu0 %v305
    %v307 = vpop.f32.mrf.mxu0
    %v308 = vadd.f32 %v249, %v307
    %309 = vdwg.mxu0
    %310 = vmatpush.msra.mxu0 0.0
    %311 = vmatpush.msra.mxu0 0.0
    %312 = vmatpush.msra.mxu0 0.0
    %313 = vmatpush.msra.mxu0 0.0
    %314 = vmatpush.msra.mxu0 0.0
    %315 = vmatpush.msra.mxu0 0.0
    %316 = vmatpush.msra.mxu0 0.0
    %317 = vmatpush.msra.mxu0 0.0
    %318 = vmatpush.msra.mxu0 0.0
    %319 = vmatpush.msra.mxu0 0.0
    %320 = vmatpush.msra.mxu0 0.0
    %321 = vmatpush.msra.mxu0 0.0
    %322 = vmatpush.msra.mxu0 0.0
    %323 = vmatpush.msra.mxu0 0.0
    %324 = vmatpush.msra.mxu0 0.0
    %v325 = vand.u32 %v113, 4294901760
    %326 = vmatpush.msra.mxu0 %v325
    %v327 = vand.u32 %v88, 4294901760
    %v328 = vsub.f32 %v88, %v327
    %v329 = vand.u32 %v328, 4294901760
    %330 = vmatmul.f32.gmra.mxu0 %v329
    %v331 = vpop.f32.mrf.mxu0
    %v332 = vadd.f32 %v273, %v331
    %v333 = vand.u32 %v91, 4294901760
    %v334 = vsub.f32 %v91, %v333
    %v335 = vand.u32 %v334, 4294901760
    %336 = vmatmul.f32.gmra.mxu0 %v335
    %v337 = vpop.f32.mrf.mxu0
    %v338 = vadd.f32 %v278, %v337
    %v339 = vand.u32 %v94, 4294901760
    %v340 = vsub.f32 %v94, %v339
    %v341 = vand.u32 %v340, 4294901760
    %342 = vmatmul.f32.gmra.mxu0 %v341
    %v343 = vpop.f32.mrf.mxu0
    %v344 = vadd.f32 %v283, %v343
    %v345 = vand.u32 %v97, 4294901760
    %v346 = vsub.f32 %v97, %v345
    %v347 = vand.u32 %v346, 4294901760
    %348 = vmatmul.f32.gmra.mxu0 %v347
    %v349 = vpop.f32.mrf.mxu0
    %v350 = vadd.f32 %v288, %v349
    %v351 = vand.u32 %v100, 4294901760
    %v352 = vsub.f32 %v100, %v351
    %v353 = vand.u32 %v352, 4294901760
    %354 = vmatmul.f32.gmra.mxu0 %v353
    %v355 = vpop.f32.mrf.mxu0
    %v356 = vadd.f32 %v293, %v355
    %v357 = vand.u32 %v103, 4294901760
    %v358 = vsub.f32 %v103, %v357
    %v359 = vand.u32 %v358, 4294901760
    %360 = vmatmul.f32.gmra.mxu0 %v359
    %v361 = vpop.f32.mrf.mxu0
    %v362 = vadd.f32 %v298, %v361
    %v363 = vand.u32 %v106, 4294901760
    %v364 = vsub.f32 %v106, %v363
    %v365 = vand.u32 %v364, 4294901760
    %366 = vmatmul.f32.gmra.mxu0 %v365
    %v367 = vpop.f32.mrf.mxu0
    %v368 = vadd.f32 %v303, %v367
    %v369 = vand.u32 %v109, 4294901760
    %v370 = vsub.f32 %v109, %v369
    %v371 = vand.u32 %v370, 4294901760
    %372 = vmatmul.f32.gmra.mxu0 %v371
    %v373 = vpop.f32.mrf.mxu0
    %v374 = vadd.f32 %v308, %v373
    %375 = vdwg.mxu0
    %376 = vmatpush.msra.mxu0 0.0
    %377 = vmatpush.msra.mxu0 0.0
    %378 = vmatpush.msra.mxu0 0.0
    %379 = vmatpush.msra.mxu0 0.0
    %380 = vmatpush.msra.mxu0 0.0
    %381 = vmatpush.msra.mxu0 0.0
    %382 = vmatpush.msra.mxu0 0.0
    %383 = vmatpush.msra.mxu0 0.0
    %384 = vmatpush.msra.mxu0 0.0
    %385 = vmatpush.msra.mxu0 0.0
    %386 = vmatpush.msra.mxu0 0.0
    %387 = vmatpush.msra.mxu0 0.0
    %388 = vmatpush.msra.mxu0 0.0
    %389 = vmatpush.msra.mxu0 0.0
    %390 = vmatpush.msra.mxu0 0.0
    %v391 = vand.u32 %v113, 4294901760
    %v392 = vsub.f32 %v113, %v391
    %v393 = vand.u32 %v392, 4294901760
    %394 = vmatpush.msra.mxu0 %v393
    %v395 = vand.u32 %v88, 4294901760
    %396 = vmatmul.f32.gmra.mxu0 %v395
    %v397 = vpop.f32.mrf.mxu0
    %v398 = vadd.f32 %v332, %v397
    %v399 = vand.u32 %v91, 4294901760
    %400 = vmatmul.f32.gmra.mxu0 %v399
    %v401 = vpop.f32.mrf.mxu0
    %v402 = vadd.f32 %v338, %v401
    %v403 = vand.u32 %v94, 4294901760
    %404 = vmatmul.f32.gmra.mxu0 %v403
    %v405 = vpop.f32.mrf.mxu0
    %v406 = vadd.f32 %v344, %v405
    %v407 = vand.u32 %v97, 4294901760
    %408 = vmatmul.f32.gmra.mxu0 %v407
    %v409 = vpop.f32.mrf.mxu0
    %v410 = vadd.f32 %v350, %v409
    %v411 = vand.u32 %v100, 4294901760
    %412 = vmatmul.f32.gmra.mxu0 %v411
    %v413 = vpop.f32.mrf.mxu0
    %v414 = vadd.f32 %v356, %v413
    %v415 = vand.u32 %v103, 4294901760
    %416 = vmatmul.f32.gmra.mxu0 %v415
    %v417 = vpop.f32.mrf.mxu0
    %v418 = vadd.f32 %v362, %v417
    %v419 = vand.u32 %v106, 4294901760
    %420 = vmatmul.f32.gmra.mxu0 %v419
    %v421 = vpop.f32.mrf.mxu0
    %v422 = vadd.f32 %v368, %v421
    %v423 = vand.u32 %v109, 4294901760
    %424 = vmatmul.f32.gmra.mxu0 %v423
    %v425 = vpop.f32.mrf.mxu0
    %v426 = vadd.f32 %v374, %v425
    %427 = vdwg.mxu0
    %428 = vmatpush.msra.mxu0 0.0
    %429 = vmatpush.msra.mxu0 0.0
    %430 = vmatpush.msra.mxu0 0.0
    %431 = vmatpush.msra.mxu0 0.0
    %432 = vmatpush.msra.mxu0 0.0
    %433 = vmatpush.msra.mxu0 0.0
    %434 = vmatpush.msra.mxu0 0.0
    %435 = vmatpush.msra.mxu0 0.0
    %436 = vmatpush.msra.mxu0 0.0
    %437 = vmatpush.msra.mxu0 0.0
    %438 = vmatpush.msra.mxu0 0.0
    %439 = vmatpush.msra.mxu0 0.0
    %440 = vmatpush.msra.mxu0 0.0
    %441 = vmatpush.msra.mxu0 0.0
    %442 = vmatpush.msra.mxu0 0.0
    %v443 = vand.u32 %v113, 4294901760
    %444 = vmatpush.msra.mxu0 %v443
    %v445 = vand.u32 %v88, 4294901760
    %446 = vmatmul.f32.gmra.mxu0 %v445
    %v447 = vpop.f32.mrf.mxu0
    %v448 = vadd.f32 %v398, %v447
    %v449 = vand.u32 %v91, 4294901760
    %450 = vmatmul.f32.gmra.mxu0 %v449
    %v451 = vpop.f32.mrf.mxu0
    %v452 = vadd.f32 %v402, %v451
    %v453 = vand.u32 %v94, 4294901760
    %454 = vmatmul.f32.gmra.mxu0 %v453
    %v455 = vpop.f32.mrf.mxu0
    %v456 = vadd.f32 %v406, %v455
    %v457 = vand.u32 %v97, 4294901760
    %458 = vmatmul.f32.gmra.mxu0 %v457
    %v459 = vpop.f32.mrf.mxu0
    %v460 = vadd.f32 %v410, %v459
    %v461 = vand.u32 %v100, 4294901760
    %462 = vmatmul.f32.gmra.mxu0 %v461
    %v463 = vpop.f32.mrf.mxu0
    %v464 = vadd.f32 %v414, %v463
    %v465 = vand.u32 %v103, 4294901760
    %466 = vmatmul.f32.gmra.mxu0 %v465
    %v467 = vpop.f32.mrf.mxu0
    %v468 = vadd.f32 %v418, %v467
    %v469 = vand.u32 %v106, 4294901760
    %470 = vmatmul.f32.gmra.mxu0 %v469
    %v471 = vpop.f32.mrf.mxu0
    %v472 = vadd.f32 %v422, %v471
    %v473 = vand.u32 %v109, 4294901760
    %474 = vmatmul.f32.gmra.mxu0 %v473
    %v475 = vpop.f32.mrf.mxu0
    %v476 = vadd.f32 %v426, %v475
    %477 = vdwg.mxu0
    %v478 = vtanh.pop %v448
    %v479 = vtanh.pop %v452
    %v480 = vtanh.pop %v456
    %v481 = vtanh.pop %v460
    %v482 = vtanh.pop %v464
    %v483 = vtanh.pop %v468
    %v484 = vtanh.pop %v472
    %v485 = vtanh.pop %v476
    %v486 = vld [vmem:[%s3] sm:$0xff]
    %v487 = vld [vmem:[%s3 + $0x8] sm:$0xff]
    %v488 = vld [vmem:[%s3 + $0x10] sm:$0xff]
    %v489 = vld [vmem:[%s3 + $0x18] sm:$0xff]
    %v490 = vld [vmem:[%s3 + $0x20] sm:$0xff]
    %v491 = vld [vmem:[%s3 + $0x28] sm:$0xff]
    %v492 = vld [vmem:[%s3 + $0x30] sm:$0xff]
    %v493 = vld [vmem:[%s3 + $0x38] sm:$0xff]
    %v494 = vld [vmem:[%s4] sm:$0xff]
    %v495 = vld [vmem:[%s4 + $0x8] sm:$0xff]
    %v496 = vld [vmem:[%s4 + $0x10] sm:$0xff]
    %v497 = vld [vmem:[%s4 + $0x18] sm:$0xff]
    %v498 = vld [vmem:[%s4 + $0x20] sm:$0xff]
    %v499 = vld [vmem:[%s4 + $0x28] sm:$0xff]
    %v500 = vld [vmem:[%s4 + $0x30] sm:$0xff]
    %v501 = vld [vmem:[%s4 + $0x38] sm:$0xff]
    %503 = vset.pattern.permute.xlu0 0
    %504 = vperm.xlu0 %503, %v494
    %v505 = vpop.permute.xlu0 %504
    %508 = vset.pattern.permute.xlu0 0
    %509 = vperm.xlu0 %508, %v495
    %v510 = vpop.permute.xlu0 %509
    %513 = vset.pattern.permute.xlu0 0
    %514 = vperm.xlu0 %513, %v496
    %v515 = vpop.permute.xlu0 %514
    %518 = vset.pattern.permute.xlu0 0
    %519 = vperm.xlu0 %518, %v497
    %v520 = vpop.permute.xlu0 %519
    %523 = vset.pattern.permute.xlu0 0
    %524 = vperm.xlu0 %523, %v498
    %v525 = vpop.permute.xlu0 %524
    %528 = vset.pattern.permute.xlu0 0
    %529 = vperm.xlu0 %528, %v499
    %v530 = vpop.permute.xlu0 %529
    %533 = vset.pattern.permute.xlu0 0
    %534 = vperm.xlu0 %533, %v500
    %v535 = vpop.permute.xlu0 %534
    %538 = vset.pattern.permute.xlu0 0
    %539 = vperm.xlu0 %538, %v501
    %v540 = vpop.permute.xlu0 %539
    %vm542 = vcmask 523264
    %v544 = vsel %vm542, %v486, 0
    %v547 = vsel %vm542, %v487, 0
    %v550 = vsel %vm542, %v488, 0
    %v553 = vsel %vm542, %v489, 0
    %v556 = vsel %vm542, %v490, 0
    %v559 = vsel %vm542, %v491, 0
    %v562 = vsel %vm542, %v492, 0
    %v565 = vsel %vm542, %v493, 0
    %567 = vmatpush.msra.mxu0 0.0
    %568 = vmatpush.msra.mxu0 0.0
    %569 = vmatpush.msra.mxu0 0.0
    %570 = vmatpush.msra.mxu0 0.0
    %571 = vmatpush.msra.mxu0 0.0
    %572 = vmatpush.msra.mxu0 0.0
    %573 = vmatpush.msra.mxu0 0.0
    %574 = vmatpush.msra.mxu0 0.0
    %v575 = vand.u32 %v485, 4294901760
    %576 = vmatpush.msra.mxu0 %v575
    %v577 = vand.u32 %v484, 4294901760
    %578 = vmatpush.msra.mxu0 %v577
    %v579 = vand.u32 %v483, 4294901760
    %580 = vmatpush.msra.mxu0 %v579
    %v581 = vand.u32 %v482, 4294901760
    %582 = vmatpush.msra.mxu0 %v581
    %v583 = vand.u32 %v481, 4294901760
    %584 = vmatpush.msra.mxu0 %v583
    %v585 = vand.u32 %v480, 4294901760
    %586 = vmatpush.msra.mxu0 %v585
    %v587 = vand.u32 %v479, 4294901760
    %588 = vmatpush.msra.mxu0 %v587
    %v589 = vand.u32 %v478, 4294901760
    %590 = vmatpush.msra.mxu0 %v589
    %v591 = vand.u32 %v544, 4294901760
    %v592 = vsub.f32 %v544, %v591
    %v593 = vand.u32 %v592, 4294901760
    %v594 = vsub.f32 %v592, %v593
    %v595 = vand.u32 %v594, 4294901760
    %596 = vmatmul.f32.gmra.mxu0 %v595
    %v597 = vpop.f32.mrf.mxu0
    %v598 = vadd.f32 %v505, %v597
    %v599 = vand.u32 %v547, 4294901760
    %v600 = vsub.f32 %v547, %v599
    %v601 = vand.u32 %v600, 4294901760
    %v602 = vsub.f32 %v600, %v601
    %v603 = vand.u32 %v602, 4294901760
    %604 = vmatmul.f32.gmra.mxu0 %v603
    %v605 = vpop.f32.mrf.mxu0
    %v606 = vadd.f32 %v510, %v605
    %v607 = vand.u32 %v550, 4294901760
    %v608 = vsub.f32 %v550, %v607
    %v609 = vand.u32 %v608, 4294901760
    %v610 = vsub.f32 %v608, %v609
    %v611 = vand.u32 %v610, 4294901760
    %612 = vmatmul.f32.gmra.mxu0 %v611
    %v613 = vpop.f32.mrf.mxu0
    %v614 = vadd.f32 %v515, %v613
    %v615 = vand.u32 %v553, 4294901760
    %v616 = vsub.f32 %v553, %v615
    %v617 = vand.u32 %v616, 4294901760
    %v618 = vsub.f32 %v616, %v617
    %v619 = vand.u32 %v618, 4294901760
    %620 = vmatmul.f32.gmra.mxu0 %v619
    %v621 = vpop.f32.mrf.mxu0
    %v622 = vadd.f32 %v520, %v621
    %v623 = vand.u32 %v556, 4294901760
    %v624 = vsub.f32 %v556, %v623
    %v625 = vand.u32 %v624, 4294901760
    %v626 = vsub.f32 %v624, %v625
    %v627 = vand.u32 %v626, 4294901760
    %628 = vmatmul.f32.gmra.mxu0 %v627
    %v629 = vpop.f32.mrf.mxu0
    %v630 = vadd.f32 %v525, %v629
    %v631 = vand.u32 %v559, 4294901760
    %v632 = vsub.f32 %v559, %v631
    %v633 = vand.u32 %v632, 4294901760
    %v634 = vsub.f32 %v632, %v633
    %v635 = vand.u32 %v634, 4294901760
    %636 = vmatmul.f32.gmra.mxu0 %v635
    %v637 = vpop.f32.mrf.mxu0
    %v638 = vadd.f32 %v530, %v637
    %v639 = vand.u32 %v562, 4294901760
    %v640 = vsub.f32 %v562, %v639
    %v641 = vand.u32 %v640, 4294901760
    %v642 = vsub.f32 %v640, %v641
    %v643 = vand.u32 %v642, 4294901760
    %644 = vmatmul.f32.gmra.mxu0 %v643
    %v645 = vpop.f32.mrf.mxu0
    %v646 = vadd.f32 %v535, %v645
    %v647 = vand.u32 %v565, 4294901760
    %v648 = vsub.f32 %v565, %v647
    %v649 = vand.u32 %v648, 4294901760
    %v650 = vsub.f32 %v648, %v649
    %v651 = vand.u32 %v650, 4294901760
    %652 = vmatmul.f32.gmra.mxu0 %v651
    %v653 = vpop.f32.mrf.mxu0
    %v654 = vadd.f32 %v540, %v653
    %655 = vdwg.mxu0
    %656 = vmatpush.msra.mxu0 0.0
    %657 = vmatpush.msra.mxu0 0.0
    %658 = vmatpush.msra.mxu0 0.0
    %659 = vmatpush.msra.mxu0 0.0
    %660 = vmatpush.msra.mxu0 0.0
    %661 = vmatpush.msra.mxu0 0.0
    %662 = vmatpush.msra.mxu0 0.0
    %663 = vmatpush.msra.mxu0 0.0
    %v664 = vand.u32 %v485, 4294901760
    %v665 = vsub.f32 %v485, %v664
    %v666 = vand.u32 %v665, 4294901760
    %v667 = vsub.f32 %v665, %v666
    %v668 = vand.u32 %v667, 4294901760
    %669 = vmatpush.msra.mxu0 %v668
    %v670 = vand.u32 %v484, 4294901760
    %v671 = vsub.f32 %v484, %v670
    %v672 = vand.u32 %v671, 4294901760
    %v673 = vsub.f32 %v671, %v672
    %v674 = vand.u32 %v673, 4294901760
    %675 = vmatpush.msra.mxu0 %v674
    %v676 = vand.u32 %v483, 4294901760
    %v677 = vsub.f32 %v483, %v676
    %v678 = vand.u32 %v677, 4294901760
    %v679 = vsub.f32 %v677, %v678
    %v680 = vand.u32 %v679, 4294901760
    %681 = vmatpush.msra.mxu0 %v680
    %v682 = vand.u32 %v482, 4294901760
    %v683 = vsub.f32 %v482, %v682
    %v684 = vand.u32 %v683, 4294901760
    %v685 = vsub.f32 %v683, %v684
    %v686 = vand.u32 %v685, 4294901760
    %687 = vmatpush.msra.mxu0 %v686
    %v688 = vand.u32 %v481, 4294901760
    %v689 = vsub.f32 %v481, %v688
    %v690 = vand.u32 %v689, 4294901760
    %v691 = vsub.f32 %v689, %v690
    %v692 = vand.u32 %v691, 4294901760
    %693 = vmatpush.msra.mxu0 %v692
    %v694 = vand.u32 %v480, 4294901760
    %v695 = vsub.f32 %v480, %v694
    %v696 = vand.u32 %v695, 4294901760
    %v697 = vsub.f32 %v695, %v696
    %v698 = vand.u32 %v697, 4294901760
    %699 = vmatpush.msra.mxu0 %v698
    %v700 = vand.u32 %v479, 4294901760
    %v701 = vsub.f32 %v479, %v700
    %v702 = vand.u32 %v701, 4294901760
    %v703 = vsub.f32 %v701, %v702
    %v704 = vand.u32 %v703, 4294901760
    %705 = vmatpush.msra.mxu0 %v704
    %v706 = vand.u32 %v478, 4294901760
    %v707 = vsub.f32 %v478, %v706
    %v708 = vand.u32 %v707, 4294901760
    %v709 = vsub.f32 %v707, %v708
    %v710 = vand.u32 %v709, 4294901760
    %711 = vmatpush.msra.mxu0 %v710
    %v712 = vand.u32 %v544, 4294901760
    %713 = vmatmul.f32.gmra.mxu0 %v712
    %v714 = vpop.f32.mrf.mxu0
    %v715 = vadd.f32 %v598, %v714
    %v716 = vand.u32 %v547, 4294901760
    %717 = vmatmul.f32.gmra.mxu0 %v716
    %v718 = vpop.f32.mrf.mxu0
    %v719 = vadd.f32 %v606, %v718
    %v720 = vand.u32 %v550, 4294901760
    %721 = vmatmul.f32.gmra.mxu0 %v720
    %v722 = vpop.f32.mrf.mxu0
    %v723 = vadd.f32 %v614, %v722
    %v724 = vand.u32 %v553, 4294901760
    %725 = vmatmul.f32.gmra.mxu0 %v724
    %v726 = vpop.f32.mrf.mxu0
    %v727 = vadd.f32 %v622, %v726
    %v728 = vand.u32 %v556, 4294901760
    %729 = vmatmul.f32.gmra.mxu0 %v728
    %v730 = vpop.f32.mrf.mxu0
    %v731 = vadd.f32 %v630, %v730
    %v732 = vand.u32 %v559, 4294901760
    %733 = vmatmul.f32.gmra.mxu0 %v732
    %v734 = vpop.f32.mrf.mxu0
    %v735 = vadd.f32 %v638, %v734
    %v736 = vand.u32 %v562, 4294901760
    %737 = vmatmul.f32.gmra.mxu0 %v736
    %v738 = vpop.f32.mrf.mxu0
    %v739 = vadd.f32 %v646, %v738
    %v740 = vand.u32 %v565, 4294901760
    %741 = vmatmul.f32.gmra.mxu0 %v740
    %v742 = vpop.f32.mrf.mxu0
    %v743 = vadd.f32 %v654, %v742
    %744 = vdwg.mxu0
    %745 = vmatpush.msra.mxu0 0.0
    %746 = vmatpush.msra.mxu0 0.0
    %747 = vmatpush.msra.mxu0 0.0
    %748 = vmatpush.msra.mxu0 0.0
    %749 = vmatpush.msra.mxu0 0.0
    %750 = vmatpush.msra.mxu0 0.0
    %751 = vmatpush.msra.mxu0 0.0
    %752 = vmatpush.msra.mxu0 0.0
    %v753 = vand.u32 %v485, 4294901760
    %v754 = vsub.f32 %v485, %v753
    %755 = vmatpush.msra.mxu0 %v754
    %v756 = vand.u32 %v484, 4294901760
    %v757 = vsub.f32 %v484, %v756
    %758 = vmatpush.msra.mxu0 %v757
    %v759 = vand.u32 %v483, 4294901760
    %v760 = vsub.f32 %v483, %v759
    %761 = vmatpush.msra.mxu0 %v760
    %v762 = vand.u32 %v482, 4294901760
    %v763 = vsub.f32 %v482, %v762
    %764 = vmatpush.msra.mxu0 %v763
    %v765 = vand.u32 %v481, 4294901760
    %v766 = vsub.f32 %v481, %v765
    %767 = vmatpush.msra.mxu0 %v766
    %v768 = vand.u32 %v480, 4294901760
    %v769 = vsub.f32 %v480, %v768
    %770 = vmatpush.msra.mxu0 %v769
    %v771 = vand.u32 %v479, 4294901760
    %v772 = vsub.f32 %v479, %v771
    %773 = vmatpush.msra.mxu0 %v772
    %v774 = vand.u32 %v478, 4294901760
    %v775 = vsub.f32 %v478, %v774
    %776 = vmatpush.msra.mxu0 %v775
    %v777 = vand.u32 %v544, 4294901760
    %v778 = vsub.f32 %v544, %v777
    %779 = vmatmul.f32.gmra.mxu0 %v778
    %v780 = vpop.f32.mrf.mxu0
    %v781 = vadd.f32 %v715, %v780
    %v782 = vand.u32 %v547, 4294901760
    %v783 = vsub.f32 %v547, %v782
    %784 = vmatmul.f32.gmra.mxu0 %v783
    %v785 = vpop.f32.mrf.mxu0
    %v786 = vadd.f32 %v719, %v785
    %v787 = vand.u32 %v550, 4294901760
    %v788 = vsub.f32 %v550, %v787
    %789 = vmatmul.f32.gmra.mxu0 %v788
    %v790 = vpop.f32.mrf.mxu0
    %v791 = vadd.f32 %v723, %v790
    %v792 = vand.u32 %v553, 4294901760
    %v793 = vsub.f32 %v553, %v792
    %794 = vmatmul.f32.gmra.mxu0 %v793
    %v795 = vpop.f32.mrf.mxu0
    %v796 = vadd.f32 %v727, %v795
    %v797 = vand.u32 %v556, 4294901760
    %v798 = vsub.f32 %v556, %v797
    %799 = vmatmul.f32.gmra.mxu0 %v798
    %v800 = vpop.f32.mrf.mxu0
    %v801 = vadd.f32 %v731, %v800
    %v802 = vand.u32 %v559, 4294901760
    %v803 = vsub.f32 %v559, %v802
    %804 = vmatmul.f32.gmra.mxu0 %v803
    %v805 = vpop.f32.mrf.mxu0
    %v806 = vadd.f32 %v735, %v805
    %v807 = vand.u32 %v562, 4294901760
    %v808 = vsub.f32 %v562, %v807
    %809 = vmatmul.f32.gmra.mxu0 %v808
    %v810 = vpop.f32.mrf.mxu0
    %v811 = vadd.f32 %v739, %v810
    %v812 = vand.u32 %v565, 4294901760
    %v813 = vsub.f32 %v565, %v812
    %814 = vmatmul.f32.gmra.mxu0 %v813
    %v815 = vpop.f32.mrf.mxu0
    %v816 = vadd.f32 %v743, %v815
    %817 = vdwg.mxu0
    %818 = vmatpush.msra.mxu0 0.0
    %819 = vmatpush.msra.mxu0 0.0
    %820 = vmatpush.msra.mxu0 0.0
    %821 = vmatpush.msra.mxu0 0.0
    %822 = vmatpush.msra.mxu0 0.0
    %823 = vmatpush.msra.mxu0 0.0
    %824 = vmatpush.msra.mxu0 0.0
    %825 = vmatpush.msra.mxu0 0.0
    %v826 = vand.u32 %v485, 4294901760
    %827 = vmatpush.msra.mxu0 %v826
    %v828 = vand.u32 %v484, 4294901760
    %829 = vmatpush.msra.mxu0 %v828
    %v830 = vand.u32 %v483, 4294901760
    %831 = vmatpush.msra.mxu0 %v830
    %v832 = vand.u32 %v482, 4294901760
    %833 = vmatpush.msra.mxu0 %v832
    %v834 = vand.u32 %v481, 4294901760
    %835 = vmatpush.msra.mxu0 %v834
    %v836 = vand.u32 %v480, 4294901760
    %837 = vmatpush.msra.mxu0 %v836
    %v838 = vand.u32 %v479, 4294901760
    %839 = vmatpush.msra.mxu0 %v838
    %v840 = vand.u32 %v478, 4294901760
    %841 = vmatpush.msra.mxu0 %v840
    %v842 = vand.u32 %v544, 4294901760
    %v843 = vsub.f32 %v544, %v842
    %v844 = vand.u32 %v843, 4294901760
    %845 = vmatmul.f32.gmra.mxu0 %v844
    %v846 = vpop.f32.mrf.mxu0
    %v847 = vadd.f32 %v781, %v846
    %v848 = vand.u32 %v547, 4294901760
    %v849 = vsub.f32 %v547, %v848
    %v850 = vand.u32 %v849, 4294901760
    %851 = vmatmul.f32.gmra.mxu0 %v850
    %v852 = vpop.f32.mrf.mxu0
    %v853 = vadd.f32 %v786, %v852
    %v854 = vand.u32 %v550, 4294901760
    %v855 = vsub.f32 %v550, %v854
    %v856 = vand.u32 %v855, 4294901760
    %857 = vmatmul.f32.gmra.mxu0 %v856
    %v858 = vpop.f32.mrf.mxu0
    %v859 = vadd.f32 %v791, %v858
    %v860 = vand.u32 %v553, 4294901760
    %v861 = vsub.f32 %v553, %v860
    %v862 = vand.u32 %v861, 4294901760
    %863 = vmatmul.f32.gmra.mxu0 %v862
    %v864 = vpop.f32.mrf.mxu0
    %v865 = vadd.f32 %v796, %v864
    %v866 = vand.u32 %v556, 4294901760
    %v867 = vsub.f32 %v556, %v866
    %v868 = vand.u32 %v867, 4294901760
    %869 = vmatmul.f32.gmra.mxu0 %v868
    %v870 = vpop.f32.mrf.mxu0
    %v871 = vadd.f32 %v801, %v870
    %v872 = vand.u32 %v559, 4294901760
    %v873 = vsub.f32 %v559, %v872
    %v874 = vand.u32 %v873, 4294901760
    %875 = vmatmul.f32.gmra.mxu0 %v874
    %v876 = vpop.f32.mrf.mxu0
    %v877 = vadd.f32 %v806, %v876
    %v878 = vand.u32 %v562, 4294901760
    %v879 = vsub.f32 %v562, %v878
    %v880 = vand.u32 %v879, 4294901760
    %881 = vmatmul.f32.gmra.mxu0 %v880
    %v882 = vpop.f32.mrf.mxu0
    %v883 = vadd.f32 %v811, %v882
    %v884 = vand.u32 %v565, 4294901760
    %v885 = vsub.f32 %v565, %v884
    %v886 = vand.u32 %v885, 4294901760
    %887 = vmatmul.f32.gmra.mxu0 %v886
    %v888 = vpop.f32.mrf.mxu0
    %v889 = vadd.f32 %v816, %v888
    %890 = vdwg.mxu0
    %891 = vmatpush.msra.mxu0 0.0
    %892 = vmatpush.msra.mxu0 0.0
    %893 = vmatpush.msra.mxu0 0.0
    %894 = vmatpush.msra.mxu0 0.0
    %895 = vmatpush.msra.mxu0 0.0
    %896 = vmatpush.msra.mxu0 0.0
    %897 = vmatpush.msra.mxu0 0.0
    %898 = vmatpush.msra.mxu0 0.0
    %v899 = vand.u32 %v485, 4294901760
    %v900 = vsub.f32 %v485, %v899
    %v901 = vand.u32 %v900, 4294901760
    %902 = vmatpush.msra.mxu0 %v901
    %v903 = vand.u32 %v484, 4294901760
    %v904 = vsub.f32 %v484, %v903
    %v905 = vand.u32 %v904, 4294901760
    %906 = vmatpush.msra.mxu0 %v905
    %v907 = vand.u32 %v483, 4294901760
    %v908 = vsub.f32 %v483, %v907
    %v909 = vand.u32 %v908, 4294901760
    %910 = vmatpush.msra.mxu0 %v909
    %v911 = vand.u32 %v482, 4294901760
    %v912 = vsub.f32 %v482, %v911
    %v913 = vand.u32 %v912, 4294901760
    %914 = vmatpush.msra.mxu0 %v913
    %v915 = vand.u32 %v481, 4294901760
    %v916 = vsub.f32 %v481, %v915
    %v917 = vand.u32 %v916, 4294901760
    %918 = vmatpush.msra.mxu0 %v917
    %v919 = vand.u32 %v480, 4294901760
    %v920 = vsub.f32 %v480, %v919
    %v921 = vand.u32 %v920, 4294901760
    %922 = vmatpush.msra.mxu0 %v921
    %v923 = vand.u32 %v479, 4294901760
    %v924 = vsub.f32 %v479, %v923
    %v925 = vand.u32 %v924, 4294901760
    %926 = vmatpush.msra.mxu0 %v925
    %v927 = vand.u32 %v478, 4294901760
    %v928 = vsub.f32 %v478, %v927
    %v929 = vand.u32 %v928, 4294901760
    %930 = vmatpush.msra.mxu0 %v929
    %v931 = vand.u32 %v544, 4294901760
    %932 = vmatmul.f32.gmra.mxu0 %v931
    %v933 = vpop.f32.mrf.mxu0
    %v934 = vadd.f32 %v847, %v933
    %v935 = vand.u32 %v547, 4294901760
    %936 = vmatmul.f32.gmra.mxu0 %v935
    %v937 = vpop.f32.mrf.mxu0
    %v938 = vadd.f32 %v853, %v937
    %v939 = vand.u32 %v550, 4294901760
    %940 = vmatmul.f32.gmra.mxu0 %v939
    %v941 = vpop.f32.mrf.mxu0
    %v942 = vadd.f32 %v859, %v941
    %v943 = vand.u32 %v553, 4294901760
    %944 = vmatmul.f32.gmra.mxu0 %v943
    %v945 = vpop.f32.mrf.mxu0
    %v946 = vadd.f32 %v865, %v945
    %v947 = vand.u32 %v556, 4294901760
    %948 = vmatmul.f32.gmra.mxu0 %v947
    %v949 = vpop.f32.mrf.mxu0
    %v950 = vadd.f32 %v871, %v949
    %v951 = vand.u32 %v559, 4294901760
    %952 = vmatmul.f32.gmra.mxu0 %v951
    %v953 = vpop.f32.mrf.mxu0
    %v954 = vadd.f32 %v877, %v953
    %v955 = vand.u32 %v562, 4294901760
    %956 = vmatmul.f32.gmra.mxu0 %v955
    %v957 = vpop.f32.mrf.mxu0
    %v958 = vadd.f32 %v883, %v957
    %v959 = vand.u32 %v565, 4294901760
    %960 = vmatmul.f32.gmra.mxu0 %v959
    %v961 = vpop.f32.mrf.mxu0
    %v962 = vadd.f32 %v889, %v961
    %963 = vdwg.mxu0
    %964 = vmatpush.msra.mxu0 0.0
    %965 = vmatpush.msra.mxu0 0.0
    %966 = vmatpush.msra.mxu0 0.0
    %967 = vmatpush.msra.mxu0 0.0
    %968 = vmatpush.msra.mxu0 0.0
    %969 = vmatpush.msra.mxu0 0.0
    %970 = vmatpush.msra.mxu0 0.0
    %971 = vmatpush.msra.mxu0 0.0
    %v972 = vand.u32 %v485, 4294901760
    %973 = vmatpush.msra.mxu0 %v972
    %v974 = vand.u32 %v484, 4294901760
    %975 = vmatpush.msra.mxu0 %v974
    %v976 = vand.u32 %v483, 4294901760
    %977 = vmatpush.msra.mxu0 %v976
    %v978 = vand.u32 %v482, 4294901760
    %979 = vmatpush.msra.mxu0 %v978
    %v980 = vand.u32 %v481, 4294901760
    %981 = vmatpush.msra.mxu0 %v980
    %v982 = vand.u32 %v480, 4294901760
    %983 = vmatpush.msra.mxu0 %v982
    %v984 = vand.u32 %v479, 4294901760
    %985 = vmatpush.msra.mxu0 %v984
    %v986 = vand.u32 %v478, 4294901760
    %987 = vmatpush.msra.mxu0 %v986
    %v988 = vand.u32 %v544, 4294901760
    %989 = vmatmul.f32.gmra.mxu0 %v988
    %v990 = vpop.f32.mrf.mxu0
    %v991 = vadd.f32 %v934, %v990
    %v992 = vand.u32 %v547, 4294901760
    %993 = vmatmul.f32.gmra.mxu0 %v992
    %v994 = vpop.f32.mrf.mxu0
    %v995 = vadd.f32 %v938, %v994
    %v996 = vand.u32 %v550, 4294901760
    %997 = vmatmul.f32.gmra.mxu0 %v996
    %v998 = vpop.f32.mrf.mxu0
    %v999 = vadd.f32 %v942, %v998
    %v1000 = vand.u32 %v553, 4294901760
    %1001 = vmatmul.f32.gmra.mxu0 %v1000
    %v1002 = vpop.f32.mrf.mxu0
    %v1003 = vadd.f32 %v946, %v1002
    %v1004 = vand.u32 %v556, 4294901760
    %1005 = vmatmul.f32.gmra.mxu0 %v1004
    %v1006 = vpop.f32.mrf.mxu0
    %v1007 = vadd.f32 %v950, %v1006
    %v1008 = vand.u32 %v559, 4294901760
    %1009 = vmatmul.f32.gmra.mxu0 %v1008
    %v1010 = vpop.f32.mrf.mxu0
    %v1011 = vadd.f32 %v954, %v1010
    %v1012 = vand.u32 %v562, 4294901760
    %1013 = vmatmul.f32.gmra.mxu0 %v1012
    %v1014 = vpop.f32.mrf.mxu0
    %v1015 = vadd.f32 %v958, %v1014
    %v1016 = vand.u32 %v565, 4294901760
    %1017 = vmatmul.f32.gmra.mxu0 %v1016
    %v1018 = vpop.f32.mrf.mxu0
    %v1019 = vadd.f32 %v962, %v1018
    %1020 = vdwg.mxu0
    %v1021 = vtanh.pop %v991
    %v1022 = vtanh.pop %v995
    %v1023 = vtanh.pop %v999
    %v1024 = vtanh.pop %v1003
    %v1025 = vtanh.pop %v1007
    %v1026 = vtanh.pop %v1011
    %v1027 = vtanh.pop %v1015
    %v1028 = vtanh.pop %v1019
    %v1029 = vld [vmem:[%s5] sm:$0xff]
    %v1030 = vld [vmem:[%s5 + $0x8] sm:$0xff]
    %v1031 = vld [vmem:[%s5 + $0x10] sm:$0xff]
    %v1032 = vld [vmem:[%s5 + $0x18] sm:$0xff]
    %v1033 = vld [vmem:[%s5 + $0x20] sm:$0xff]
    %v1034 = vld [vmem:[%s5 + $0x28] sm:$0xff]
    %v1035 = vld [vmem:[%s5 + $0x30] sm:$0xff]
    %v1036 = vld [vmem:[%s5 + $0x38] sm:$0xff]
    %1038 = vset.pattern.permute.xlu0 0
    %1039 = vperm.xlu0 %1038, %v1029
    %v1040 = vpop.permute.xlu0 %1039
    %1043 = vset.pattern.permute.xlu0 0
    %1044 = vperm.xlu0 %1043, %v1030
    %v1045 = vpop.permute.xlu0 %1044
    %1048 = vset.pattern.permute.xlu0 0
    %1049 = vperm.xlu0 %1048, %v1031
    %v1050 = vpop.permute.xlu0 %1049
    %1053 = vset.pattern.permute.xlu0 0
    %1054 = vperm.xlu0 %1053, %v1032
    %v1055 = vpop.permute.xlu0 %1054
    %1058 = vset.pattern.permute.xlu0 0
    %1059 = vperm.xlu0 %1058, %v1033
    %v1060 = vpop.permute.xlu0 %1059
    %1063 = vset.pattern.permute.xlu0 0
    %1064 = vperm.xlu0 %1063, %v1034
    %v1065 = vpop.permute.xlu0 %1064
    %1068 = vset.pattern.permute.xlu0 0
    %1069 = vperm.xlu0 %1068, %v1035
    %v1070 = vpop.permute.xlu0 %1069
    %1073 = vset.pattern.permute.xlu0 0
    %1074 = vperm.xlu0 %1073, %v1036
    %v1075 = vpop.permute.xlu0 %1074
    %v1077 = vmul.f32 %v1040, %v1021
    %v1078 = vmul.f32 %v1045, %v1022
    %v1079 = vmul.f32 %v1050, %v1023
    %v1080 = vmul.f32 %v1055, %v1024
    %v1081 = vmul.f32 %v1060, %v1025
    %v1082 = vmul.f32 %v1065, %v1026
    %v1083 = vmul.f32 %v1070, %v1027
    %v1084 = vmul.f32 %v1075, %v1028
    %v1085 = vadd.f32 %v1077, %v1078
    %v1086 = vadd.f32 %v1085, %v1079
    %v1087 = vadd.f32 %v1086, %v1080
    %v1088 = vadd.f32 %v1087, %v1081
    %v1089 = vadd.f32 %v1088, %v1082
    %v1090 = vadd.f32 %v1089, %v1083
    %v1091 = vadd.f32 %v1090, %v1084
    %v1092 = vrot.slane %v1091, 4
    %v1093 = vadd.f32 %v1091, %v1092
    %v1094 = vrot.slane %v1093, 2
    %v1095 = vadd.f32 %v1093, %v1094
    %v1096 = vrot.slane %v1095, 1
    %v1097 = vadd.f32 %v1095, %v1096
    %v1098 = vld [vmem:[#allocation2] sm:$0x1]
    %1100 = vset.pattern.permute.xlu0 0
    %1101 = vperm.xlu0 %1100, %v1098
    %v1102 = vpop.permute.xlu0 %1101
    %v1104 = vperm.slane %v1102, 0
    %v1105 = vadd.f32 %v1097, %v1104
    %1106 = vst [vmem:[#allocation3] sm:$0x1] %v1105
    // Predicated region
    $region30: #{tpu_custom_call.1} parent=1 // pred_check
      _
    $region31: #{tpu_custom_call.1} parent=1 // pred_check_branch
      %1108 = sbr.rel (0) target = $region33
    $region32: #{tpu_custom_call.1} parent=1 // pred_region
      %1110 = vsyncadd [#allocation4], 0
      %s1112 = sshll.u32 [#allocation3], 4
      %s1113 = int_to_ptr.vmem [resolvable:$true] %s1112
      %s1114 = sshll.u32 %s7, 4
      %s1115 = int_to_ptr.hbm [resolvable:$true] %s1114
      %1117 = dma.vmem_to_hbm [thread:$0]  %s1113, 16, %s1115, [#allocation4]
    $region33: #{tpu_custom_call.1} parent=1 // pred_fallthru
      _
    // Predicated region
    $region34: #{tpu_custom_call.1} parent=1 // pred_check
      _
    $region35: #{tpu_custom_call.1} parent=1 // pred_check_branch
      %1119 = sbr.rel (0) target = $region37
    $region36: #{tpu_custom_call.1} parent=1 // pred_region
      %1121 = dma.done [#allocation4], 16
    $region37: #{tpu_custom_call.1} parent=1 // pred_fallthru
      _
    %1122 = vsyncpa [#allocation4], 1

</llo_original>
